<compile_context>
chip_gen: v7x
topology: tpu7x:2x2x1
jax: 0.10.0
libtpu: 0.0.40
codegen_flags: <defaults>
</compile_context>

<pallas_src>
import jax
import jax.numpy as jnp
from jax.experimental import pallas as pl
from jax.experimental.pallas import tpu as pltpu


_SMALL_BYTES = 2 << 20           # below this per operand: let XLA fuse the add
_TARGET_TILE_BYTES = 4 << 20     # ~4 MiB per pipeline buffer
_DEFAULT_SCOPED_VMEM = 12 << 20  # keep resident <= this to stay under v5e's 16 MiB default


def _add_kernel(x1_ref, x2_ref, o_ref):
    # Elementwise add on the full VMEM tile (VPU); purely HBM-bandwidth bound.
    o_ref[...] = x1_ref[...] + x2_ref[...]


def _round_up(x, m):
    return (x + m - 1) // m * m


def feature_fusion(x1, x2, *, force_pallas=False):
    """Pallas equivalent of FeatureFusion.forward: returns x1 + x2 (same shape/dtype)."""
    assert x1.shape == x2.shape and x1.dtype == x2.dtype
    orig_shape = x1.shape
    n = int(x1.size)
    itemsize = jnp.dtype(x1.dtype).itemsize

    # Small-input fast path: pallas_call dispatch + single-step overhead dominates
    # for tiny tensors; XLA fuses the add for free.
    if n == 0 or (not force_pallas and n * itemsize < _SMALL_BYTES):
        return x1 + x2

    # dtype-dependent sublane packing: 8 rows (f32), 16 (bf16/f16), 32 (int8/fp8).
    sublane = max(8, 32 // itemsize)

    # Lane-dense layout: widest lane width dividing n -> no pad, no [:n] slice.
    lane = None
    for cand in (512, 256, 128):
        if n % cand == 0:
            lane = cand
            break
    padded = lane is None
    if padded:
        lane = 512
    rows = pl.cdiv(n, lane)

    x1_flat = x1.reshape(-1)
    x2_flat = x2.reshape(-1)
    if padded:
        pad = rows * lane - n
        x1_flat = jnp.pad(x1_flat, (0, pad))
        x2_flat = jnp.pad(x2_flat, (0, pad))
    x1_2d = x1_flat.reshape(rows, lane)
    x2_2d = x2_flat.reshape(rows, lane)

    # Tile sizing: ~4 MiB/buffer, sublane-aligned; split into >=2 tiles when the
    # row count allows so the "parallel" axis can use both TensorCores on v7x.
    max_tile_rows = max(
        sublane, _TARGET_TILE_BYTES // (lane * itemsize) // sublane * sublane)
    tile_rows = min(max_tile_rows, rows)
    if rows > 2 * sublane:
        half = max(sublane, _round_up(pl.cdiv(rows, 2), sublane))
        tile_rows = min(tile_rows, half)

    grid = (pl.cdiv(rows, tile_rows),)  # ragged last block handled by Pallas
    block = pl.BlockSpec((tile_rows, lane), lambda i: (i, 0))

    # 3 arrays x 2 pipeline buffers resident in VMEM.
    resident = 3 * 2 * tile_rows * lane * itemsize
    vmem_limit = (48 << 20) if resident > _DEFAULT_SCOPED_VMEM else None

    out_2d = pl.pallas_call(
        _add_kernel,
        out_shape=jax.ShapeDtypeStruct((rows, lane), x1.dtype),
        grid=grid,
        in_specs=[block, block],
        out_specs=block,
        compiler_params=pltpu.CompilerParams(
            dimension_semantics=("parallel",),  # no reduction axis; megacore-shardable
            vmem_limit_bytes=vmem_limit,
        ),
        cost_estimate=pl.CostEstimate(
            flops=n, transcendentals=0, bytes_accessed=3 * n * itemsize),
    )(x1_2d, x2_2d)

    if padded:
        return out_2d.reshape(-1)[:n].reshape(orig_shape)
    return out_2d.reshape(orig_shape)


if __name__ == "__main__":
    # FeatureFusion has no parameters; nothing to initialize.
    key = jax.random.PRNGKey(0)
    k1, k2, k3, k4 = jax.random.split(key, 4)

    # Small NCHW inputs (module-typical shape) -> small-input fast path.
    x1 = jax.random.normal(k1, (2, 4, 16, 16), dtype=jnp.float32)
    x2 = jax.random.normal(k2, (2, 4, 16, 16), dtype=jnp.float32)
    ref = x1 + x2
    out = jax.block_until_ready(feature_fusion(x1, x2))
    assert out.shape == ref.shape and out.dtype == ref.dtype
    assert jnp.allclose(out, ref, atol=1e-6, rtol=1e-6)

    # Same small input forced through the Pallas kernel (single full-array block).
    out_p = jax.block_until_ready(feature_fusion(x1, x2, force_pallas=True))
    assert jnp.allclose(out_p, ref, atol=1e-6, rtol=1e-6)

    # Larger input: multi-block grid (lane-dense, no padding, 2 parallel tiles).
    y1 = jax.random.normal(k3, (4, 64, 64, 64), dtype=jnp.float32)
    y2 = jax.random.normal(k4, (4, 64, 64, 64), dtype=jnp.float32)
    out2 = jax.block_until_ready(feature_fusion(y1, y2))
    assert jnp.allclose(out2, y1 + y2, atol=1e-6, rtol=1e-6)

    # Awkward size + bf16, forced through the Pallas pad path.
    z1 = jax.random.normal(k1, (3, 5, 7, 11), dtype=jnp.bfloat16)
    z2 = jax.random.normal(k2, (3, 5, 7, 11), dtype=jnp.bfloat16)
    out3 = jax.block_until_ready(feature_fusion(z1, z2, force_pallas=True))
    assert out3.shape == z1.shape and out3.dtype == z1.dtype
    assert jnp.allclose(out3.astype(jnp.float32), (z1 + z2).astype(jnp.float32))

    print("KERNEL_OK")
</pallas_src>

<mosaic_0001>
module attributes {stable_mosaic.version = 11 : i64} {
  func.func @_add_kernel(%arg0: i32, %arg1: memref<4x512xf32, #tpu.memory_space<vmem>>, %arg2: memref<4x512xf32, #tpu.memory_space<vmem>>, %arg3: memref<4x512xf32, #tpu.memory_space<vmem>>) attributes {dimension_semantics = [#tpu.dimension_semantics<parallel>], iteration_bounds = array<i64: 1>, scalar_prefetch = 0 : i64, scratch_operands = 0 : i64, tpu.core_type = #tpu.core_type<tc>, window_params = [{transform_indices = @transform_0, window_bounds = array<i64: 4, 512>}, {transform_indices = @transform_1, window_bounds = array<i64: 4, 512>}, {transform_indices = @transform_2, window_bounds = array<i64: 4, 512>}]} {
    %c0 = arith.constant 0 : index
    %c0_0 = arith.constant 0 : index
    %0 = vector.load %arg1[%c0, %c0_0] : memref<4x512xf32, #tpu.memory_space<vmem>>, vector<4x512xf32>
    %c0_1 = arith.constant 0 : index
    %c0_2 = arith.constant 0 : index
    %1 = vector.load %arg2[%c0_1, %c0_2] : memref<4x512xf32, #tpu.memory_space<vmem>>, vector<4x512xf32>
    %2 = arith.addf %0, %1 : vector<4x512xf32>
    %c0_3 = arith.constant 0 : index
    %c0_4 = arith.constant 0 : index
    %3 = vector.load %arg3[%c0_3, %c0_4] : memref<4x512xf32, #tpu.memory_space<vmem>>, vector<4x512xf32>
    tpu.vector_store %arg3[%c0_3, %c0_4], %2 {strides = array<i32>} : memref<4x512xf32, #tpu.memory_space<vmem>>, vector<4x512xf32>,
    return
  }
  func.func @transform_0(%arg0: i32) -> (i32, i32) {
    %c0_i32 = arith.constant 0 : i32
    %c0_i32_0 = arith.constant 0 : i32
    return %arg0, %c0_i32 : i32, i32
  }
  func.func @transform_1(%arg0: i32) -> (i32, i32) {
    %c0_i32 = arith.constant 0 : i32
    %c0_i32_0 = arith.constant 0 : i32
    return %arg0, %c0_i32 : i32, i32
  }
  func.func @transform_2(%arg0: i32) -> (i32, i32) {
    %c0_i32 = arith.constant 0 : i32
    %c0_i32_0 = arith.constant 0 : i32
    return %arg0, %c0_i32 : i32, i32
  }
}

</mosaic_0001>

<llo_original>
// kernel: tpu_custom_call.1
$region0: #{tpu_custom_call.1}
  #allocation0 [shape = 'u32[]', space=smem, size = 0x4, offset = 0x4, fixed_abs, tag = 'smem constant byte address 0x4 - core index']
  #allocation1 [shape = 'u32[144,128]{1,0:T(1,128)}', space=vmem, size = 0x12000, scoped, tag = 'internal scratch']
  %s0 = inlined_call_operand.hbm [shape: f32[4,512], index: 0, kind: input, shape index: {}]
  %s1 = inlined_call_operand.hbm [shape: f32[4,512], index: 1, kind: input, shape index: {}]
  %s2 = inlined_call_operand.hbm [shape: f32[4,512], index: 2, kind: output, shape index: {}]
  %s3 = sld [smem:[#allocation0]]
  $region26: #{tpu_custom_call.1} parent=0
    _
  %s5 = ssub.s32 1, %s3
  %s6 = scalar_select 0, %s5, %s3
  $region1: #{tpu_custom_call.1} parent=0
    #allocation2 [shape = 'u8[8192]{0}', space=vmem, size = 0x2000, scoped, tag = 'input window, operand 0, single buffered']
    #allocation3 [shape = 's32[1]{0}', space=sflag, size = 0x4, scoped, tag = 'scoped memory for tpu_custom_call.1']
    #allocation4 [shape = 's32[1]{0}', space=sflag, size = 0x4, scoped, tag = 'scoped memory for tpu_custom_call.1']
    #allocation5 [shape = 'u8[8192]{0}', space=vmem, size = 0x2000, scoped, tag = 'input window, operand 1, single buffered']
    #allocation6 [shape = 's32[1]{0}', space=sflag, size = 0x4, scoped, tag = 'scoped memory for tpu_custom_call.1']
    #allocation7 [shape = 'u8[8192]{0}', space=vmem, size = 0x2000, scoped, tag = 'output window, operand 0, single buffered']
    %7 = vsyncpa [#allocation3], 0
    %8 = vsyncpa [#allocation6], 0
    %9 = vsyncpa [#allocation4], 0
    // Predicated region
    $region2: #{tpu_custom_call.1} parent=1 // pred_check
      _
    $region3: #{tpu_custom_call.1} parent=1 // pred_check_branch
      %11 = sbr.rel (0) target = $region5
    $region4: #{tpu_custom_call.1} parent=1 // pred_region
      %s13 = ssub.s32 256, 256
      %14 = vsyncadd [#allocation3], %s13
      %s16 = sshll.u32 [#allocation2], 4
      %s17 = int_to_ptr.vmem [resolvable:$true] %s16
      %19 = dma.hbm_to_vmem [thread:$0]  %s0, 256, %s17, [#allocation3]
    $region5: #{tpu_custom_call.1} parent=1 // pred_fallthru
      _
    // Predicated region
    $region6: #{tpu_custom_call.1} parent=1 // pred_check
      _
    $region7: #{tpu_custom_call.1} parent=1 // pred_check_branch
      %21 = sbr.rel (0) target = $region9
    $region8: #{tpu_custom_call.1} parent=1 // pred_region
      %s23 = ssub.s32 256, 256
      %24 = vsyncadd [#allocation6], %s23
      %s26 = sshll.u32 [#allocation5], 4
      %s27 = int_to_ptr.vmem [resolvable:$true] %s26
      %29 = dma.hbm_to_vmem [thread:$0]  %s1, 256, %s27, [#allocation6]
    $region9: #{tpu_custom_call.1} parent=1 // pred_fallthru
      _
    // Predicated region
    $region10: #{tpu_custom_call.1} parent=1 // pred_check
      _
    $region11: #{tpu_custom_call.1} parent=1 // pred_check_branch
      %31 = sbr.rel (0) target = $region13
    $region12: #{tpu_custom_call.1} parent=1 // pred_region
      %32 = dma.done [#allocation3], 256
    $region13: #{tpu_custom_call.1} parent=1 // pred_fallthru
      _
    // Predicated region
    $region14: #{tpu_custom_call.1} parent=1 // pred_check
      _
    $region15: #{tpu_custom_call.1} parent=1 // pred_check_branch
      %34 = sbr.rel (0) target = $region17
    $region16: #{tpu_custom_call.1} parent=1 // pred_region
      %35 = dma.done [#allocation6], 256
    $region17: #{tpu_custom_call.1} parent=1 // pred_fallthru
      _
    %v36 = vld [vmem:[#allocation2] sm:$0xff]
    %v37 = vld [vmem:[#allocation2 + $0x8] sm:$0xff]
    %v38 = vld [vmem:[#allocation5] sm:$0xff]
    %v39 = vld [vmem:[#allocation5 + $0x8] sm:$0xff]
    %v40 = vadd.f32 %v36, %v38
    %v41 = vadd.f32 %v37, %v39
    %42 = vst [vmem:[#allocation7] sm:$0xff] %v40
    %43 = vst [vmem:[#allocation7 + $0x8] sm:$0xff] %v41
    // Predicated region
    $region18: #{tpu_custom_call.1} parent=1 // pred_check
      _
    $region19: #{tpu_custom_call.1} parent=1 // pred_check_branch
      %45 = sbr.rel (0) target = $region21
    $region20: #{tpu_custom_call.1} parent=1 // pred_region
      %s47 = ssub.s32 256, 256
      %48 = vsyncadd [#allocation4], %s47
      %s50 = sshll.u32 [#allocation7], 4
      %s51 = int_to_ptr.vmem [resolvable:$true] %s50
      %53 = dma.vmem_to_hbm [thread:$0]  %s51, 256, %s2, [#allocation4]
    $region21: #{tpu_custom_call.1} parent=1 // pred_fallthru
      _
    // Predicated region
    $region22: #{tpu_custom_call.1} parent=1 // pred_check
      _
    $region23: #{tpu_custom_call.1} parent=1 // pred_check_branch
      %55 = sbr.rel (0) target = $region25
    $region24: #{tpu_custom_call.1} parent=1 // pred_region
      %56 = dma.done [#allocation4], 256
    $region25: #{tpu_custom_call.1} parent=1 // pred_fallthru
      _
    %57 = vsyncpa [#allocation3], 1
    %58 = vsyncpa [#allocation6], 1
    %59 = vsyncpa [#allocation4], 1

</llo_original>
